<compile_context>
chip_gen: v6e
topology: v6e:2x2x1
jax: 0.10.0
libtpu: 0.0.40
codegen_flags: <defaults>
</compile_context>

<pallas_src>
import functools

import jax
import jax.numpy as jnp
from jax.experimental import pallas as pl
from jax.experimental.pallas import tpu as pltpu

HID1, HID2, HID3 = 128, 256, 128
LANE = 128


def _round_up(n, m):
    return ((n + m - 1) // m) * m


def qnetwork_kernel(x_ref, w1_ref, b1_ref, w2_ref, b2_ref,
                    w3_ref, b3_ref, w4_ref, b4_ref, out_ref):
    """One (TM, K_pad) batch tile: relu(fc1) -> relu(fc2) -> relu(fc3) -> fc4.

    Matmuls run on the MXU in the weight dtype (f32 or bf16) with f32
    accumulation; bias-add / ReLU run on the VPU in f32. Intermediate
    activations are cast back to the weight dtype so bf16 weights keep the
    fast MXU path for every layer. dropout1/dropout2 are identity (eval mode).
    """
    w_dtype = w1_ref.dtype
    x = x_ref[...]

    # fc1 + ReLU
    h = jnp.dot(x, w1_ref[...], preferred_element_type=jnp.float32) + b1_ref[...]
    h = jnp.maximum(h, 0.0).astype(w_dtype)

    # fc2 + ReLU
    h = jnp.dot(h, w2_ref[...], preferred_element_type=jnp.float32) + b2_ref[...]
    h = jnp.maximum(h, 0.0).astype(w_dtype)

    # fc3 + ReLU
    h = jnp.dot(h, w3_ref[...], preferred_element_type=jnp.float32) + b3_ref[...]
    h = jnp.maximum(h, 0.0).astype(w_dtype)

    # fc4 (no activation)
    out = jnp.dot(h, w4_ref[...], preferred_element_type=jnp.float32) + b4_ref[...]
    out_ref[...] = out.astype(out_ref.dtype)


@functools.partial(jax.jit, static_argnames=("tm",))
def qnetwork_forward(x, params, *, tm=512):
    """Batch-tiled fused forward pass.

    x      : (B, state_dim) f32 or bf16
    params : (w1, b1, w2, b2, w3, b3, w4, b4); weights stored (in, out),
             weights may be f32 or bf16, biases are (1, out) f32.
    Returns: (B, action_dim) f32 Q-values.
    """
    w1, b1, w2, b2, w3, b3, w4, b4 = params
    batch, state_dim = x.shape
    action_dim = w4.shape[1]
    w_dtype = w1.dtype

    # Lane-dense padding of the narrow feature dims (state_dim=8, action_dim=4).
    k_pad = _round_up(state_dim, LANE)
    n_pad = _round_up(action_dim, LANE)

    # Batch tile: multiple of 16 satisfies both f32 (8) and bf16 (16) sublane
    # tiling; cap it at the (rounded-up) batch so tiny batches use one step.
    tm_eff = max(16, min(_round_up(tm, 16), _round_up(batch, 16)))
    b_pad = _round_up(batch, tm_eff)
    grid = (b_pad // tm_eff,)

    # Zero-pad input / edge weights so every matmul sees canonical (8,128) tiles.
    x_p = jnp.zeros((b_pad, k_pad), w_dtype).at[:batch, :state_dim].set(
        x.astype(w_dtype))
    w1_p = jnp.zeros((k_pad, HID1), w_dtype).at[:state_dim, :].set(w1)
    w4_p = jnp.zeros((HID3, n_pad), w_dtype).at[:, :action_dim].set(w4)
    b4_p = jnp.zeros((1, n_pad), jnp.float32).at[:, :action_dim].set(b4)

    batch_tile = lambda i: (i, 0)   # streams with the grid
    resident = lambda i: (0, 0)     # same block every step -> stays in VMEM

    out_p = pl.pallas_call(
        qnetwork_kernel,
        out_shape=jax.ShapeDtypeStruct((b_pad, n_pad), jnp.float32),
        grid=grid,
        in_specs=[
            pl.BlockSpec((tm_eff, k_pad), batch_tile),   # x tile
            pl.BlockSpec((k_pad, HID1), resident),       # w1
            pl.BlockSpec((1, HID1), resident),           # b1
            pl.BlockSpec((HID1, HID2), resident),        # w2
            pl.BlockSpec((1, HID2), resident),           # b2
            pl.BlockSpec((HID2, HID3), resident),        # w3
            pl.BlockSpec((1, HID3), resident),           # b3
            pl.BlockSpec((HID3, n_pad), resident),       # w4 (lane-padded)
            pl.BlockSpec((1, n_pad), resident),          # b4 (lane-padded)
        ],
        out_specs=pl.BlockSpec((tm_eff, n_pad), batch_tile),
        compiler_params=pltpu.CompilerParams(
            dimension_semantics=("parallel",)),
    )(x_p, w1_p, b1, w2, b2, w3, b3, w4_p, b4_p)

    return out_p[:batch, :action_dim]


# ------------------------- init / reference ---------------------------------

def xavier_uniform(key, fan_in, fan_out, dtype=jnp.float32):
    """torch.nn.init.xavier_uniform_ equivalent, laid out as (in, out)."""
    bound = (6.0 / (fan_in + fan_out)) ** 0.5
    return jax.random.uniform(key, (fan_in, fan_out), dtype, -bound, bound)


def linear_bias(key, fan_in, fan_out, dtype=jnp.float32):
    """PyTorch nn.Linear default bias init: U(-1/sqrt(fan_in), 1/sqrt(fan_in))."""
    bound = 1.0 / (fan_in ** 0.5)
    return jax.random.uniform(key, (1, fan_out), dtype, -bound, bound)


def init_qnetwork_params(key, state_dim, action_dim):
    ks = jax.random.split(key, 8)
    w1 = xavier_uniform(ks[0], state_dim, HID1)
    b1 = linear_bias(ks[1], state_dim, HID1)
    w2 = xavier_uniform(ks[2], HID1, HID2)
    b2 = linear_bias(ks[3], HID1, HID2)
    w3 = xavier_uniform(ks[4], HID2, HID3)
    b3 = linear_bias(ks[5], HID2, HID3)
    w4 = xavier_uniform(ks[6], HID3, action_dim)
    b4 = linear_bias(ks[7], HID3, action_dim)
    return (w1, b1, w2, b2, w3, b3, w4, b4)


def cast_weights(params, dtype):
    """Cast weights to `dtype` (e.g. bf16 for the MXU), keep biases f32."""
    w1, b1, w2, b2, w3, b3, w4, b4 = params
    return (w1.astype(dtype), b1, w2.astype(dtype), b2,
            w3.astype(dtype), b3, w4.astype(dtype), b4)


def qnetwork_reference(x, params):
    """Pure-JAX f32 reference for correctness checking."""
    w1, b1, w2, b2, w3, b3, w4, b4 = [p.astype(jnp.float32) for p in params]
    x = x.astype(jnp.float32)
    h = jnp.maximum(x @ w1 + b1, 0.0)   # dropout1: identity (eval)
    h = jnp.maximum(h @ w2 + b2, 0.0)   # dropout2: identity (eval)
    h = jnp.maximum(h @ w3 + b3, 0.0)
    return h @ w4 + b4


if __name__ == "__main__":
    # TODO(synk): dropout is implemented as identity (inference mode); training-mode
    # stochastic masking would use pltpu.prng_seed / pltpu.stateful_bernoulli.
    state_dim, action_dim, batch = 8, 4, 2

    key = jax.random.PRNGKey(0)
    k_params, k_x = jax.random.split(key)
    params = init_qnetwork_params(k_params, state_dim, action_dim)
    x = jax.random.normal(k_x, (batch, state_dim), dtype=jnp.float32)

    # f32 path — exact check against the reference.
    out = jax.block_until_ready(qnetwork_forward(x, params))
    ref = qnetwork_reference(x, params)
    assert out.shape == (batch, action_dim)
    assert jnp.allclose(out, ref, atol=1e-5, rtol=1e-5), "f32 mismatch vs reference"

    # bf16-weight path (MXU-native on v5e/v6e/v7x), f32 accumulate — loose check.
    params_bf16 = cast_weights(params, jnp.bfloat16)
    x_bf16 = x.astype(jnp.bfloat16)
    out_bf16 = jax.block_until_ready(qnetwork_forward(x_bf16, params_bf16))
    ref_bf16 = qnetwork_reference(x_bf16, params_bf16)
    assert out_bf16.shape == (batch, action_dim)
    assert jnp.allclose(out_bf16, ref_bf16, atol=5e-2, rtol=5e-2), \
        "bf16 mismatch vs reference"

    print("KERNEL_OK")
</pallas_src>

<mosaic_0001>
module attributes {stable_mosaic.version = 11 : i64} {
  func.func @qnetwork_kernel(%arg0: i32, %arg1: memref<16x128xf32, #tpu.memory_space<vmem>>, %arg2: memref<128x128xf32, #tpu.memory_space<vmem>>, %arg3: memref<1x128xf32, #tpu.memory_space<vmem>>, %arg4: memref<128x256xf32, #tpu.memory_space<vmem>>, %arg5: memref<1x256xf32, #tpu.memory_space<vmem>>, %arg6: memref<256x128xf32, #tpu.memory_space<vmem>>, %arg7: memref<1x128xf32, #tpu.memory_space<vmem>>, %arg8: memref<128x128xf32, #tpu.memory_space<vmem>>, %arg9: memref<1x128xf32, #tpu.memory_space<vmem>>, %arg10: memref<16x128xf32, #tpu.memory_space<vmem>>) attributes {dimension_semantics = [#tpu.dimension_semantics<parallel>], iteration_bounds = array<i64: 1>, scalar_prefetch = 0 : i64, scratch_operands = 0 : i64, tpu.core_type = #tpu.core_type<tc>, window_params = [{transform_indices = @transform_0, window_bounds = array<i64: 16, 128>}, {pipeline_mode = #tpu.pipeline_mode<synchronous>, transform_indices = @transform_1, window_bounds = array<i64: 128, 128>}, {pipeline_mode = #tpu.pipeline_mode<synchronous>, transform_indices = @transform_2, window_bounds = array<i64: 1, 128>}, {pipeline_mode = #tpu.pipeline_mode<synchronous>, transform_indices = @transform_3, window_bounds = array<i64: 128, 256>}, {pipeline_mode = #tpu.pipeline_mode<synchronous>, transform_indices = @transform_4, window_bounds = array<i64: 1, 256>}, {pipeline_mode = #tpu.pipeline_mode<synchronous>, transform_indices = @transform_5, window_bounds = array<i64: 256, 128>}, {pipeline_mode = #tpu.pipeline_mode<synchronous>, transform_indices = @transform_6, window_bounds = array<i64: 1, 128>}, {pipeline_mode = #tpu.pipeline_mode<synchronous>, transform_indices = @transform_7, window_bounds = array<i64: 128, 128>}, {pipeline_mode = #tpu.pipeline_mode<synchronous>, transform_indices = @transform_8, window_bounds = array<i64: 1, 128>}, {transform_indices = @transform_9, window_bounds = array<i64: 16, 128>}]} {
    %c0 = arith.constant 0 : index
    %c0_0 = arith.constant 0 : index
    %0 = vector.load %arg1[%c0, %c0_0] : memref<16x128xf32, #tpu.memory_space<vmem>>, vector<16x128xf32>
    %c0_1 = arith.constant 0 : index
    %c0_2 = arith.constant 0 : index
    %1 = vector.load %arg2[%c0_1, %c0_2] : memref<128x128xf32, #tpu.memory_space<vmem>>, vector<128x128xf32>
    %cst = arith.constant dense<0.000000e+00> : vector<16x128xf32>
    %2 = tpu.matmul %0, %1, %cst {dimension_numbers = #tpu.dot_dimension_numbers<[1], [0], [0], [1], [0, 0, 1, 1], [], []>} : vector<16x128xf32>, vector<128x128xf32>, vector<16x128xf32> -> vector<16x128xf32>
    %c0_3 = arith.constant 0 : index
    %c0_4 = arith.constant 0 : index
    %3 = vector.load %arg3[%c0_3, %c0_4] : memref<1x128xf32, #tpu.memory_space<vmem>>, vector<1x128xf32>
    %4 = vector.broadcast %3 : vector<1x128xf32> to vector<16x128xf32>
    %5 = arith.addf %2, %4 : vector<16x128xf32>
    %cst_5 = arith.constant 0.000000e+00 : f32
    %6 = vector.broadcast %cst_5 : f32 to vector<16x128xf32>
    %7 = arith.maximumf %5, %6 : vector<16x128xf32>
    %c0_6 = arith.constant 0 : index
    %c0_7 = arith.constant 0 : index
    %8 = vector.load %arg4[%c0_6, %c0_7] : memref<128x256xf32, #tpu.memory_space<vmem>>, vector<128x256xf32>
    %cst_8 = arith.constant dense<0.000000e+00> : vector<16x256xf32>
    %9 = tpu.matmul %7, %8, %cst_8 {dimension_numbers = #tpu.dot_dimension_numbers<[1], [0], [0], [1], [0, 0, 1, 1], [], []>} : vector<16x128xf32>, vector<128x256xf32>, vector<16x256xf32> -> vector<16x256xf32>
    %c0_9 = arith.constant 0 : index
    %c0_10 = arith.constant 0 : index
    %10 = vector.load %arg5[%c0_9, %c0_10] : memref<1x256xf32, #tpu.memory_space<vmem>>, vector<1x256xf32>
    %11 = vector.broadcast %10 : vector<1x256xf32> to vector<16x256xf32>
    %12 = arith.addf %9, %11 : vector<16x256xf32>
    %cst_11 = arith.constant 0.000000e+00 : f32
    %13 = vector.broadcast %cst_11 : f32 to vector<16x256xf32>
    %14 = arith.maximumf %12, %13 : vector<16x256xf32>
    %c0_12 = arith.constant 0 : index
    %c0_13 = arith.constant 0 : index
    %15 = vector.load %arg6[%c0_12, %c0_13] : memref<256x128xf32, #tpu.memory_space<vmem>>, vector<256x128xf32>
    %cst_14 = arith.constant dense<0.000000e+00> : vector<16x128xf32>
    %16 = tpu.matmul %14, %15, %cst_14 {dimension_numbers = #tpu.dot_dimension_numbers<[1], [0], [0], [1], [0, 0, 1, 1], [], []>} : vector<16x256xf32>, vector<256x128xf32>, vector<16x128xf32> -> vector<16x128xf32>
    %c0_15 = arith.constant 0 : index
    %c0_16 = arith.constant 0 : index
    %17 = vector.load %arg7[%c0_15, %c0_16] : memref<1x128xf32, #tpu.memory_space<vmem>>, vector<1x128xf32>
    %18 = vector.broadcast %17 : vector<1x128xf32> to vector<16x128xf32>
    %19 = arith.addf %16, %18 : vector<16x128xf32>
    %cst_17 = arith.constant 0.000000e+00 : f32
    %20 = vector.broadcast %cst_17 : f32 to vector<16x128xf32>
    %21 = arith.maximumf %19, %20 : vector<16x128xf32>
    %c0_18 = arith.constant 0 : index
    %c0_19 = arith.constant 0 : index
    %22 = vector.load %arg8[%c0_18, %c0_19] : memref<128x128xf32, #tpu.memory_space<vmem>>, vector<128x128xf32>
    %cst_20 = arith.constant dense<0.000000e+00> : vector<16x128xf32>
    %23 = tpu.matmul %21, %22, %cst_20 {dimension_numbers = #tpu.dot_dimension_numbers<[1], [0], [0], [1], [0, 0, 1, 1], [], []>} : vector<16x128xf32>, vector<128x128xf32>, vector<16x128xf32> -> vector<16x128xf32>
    %c0_21 = arith.constant 0 : index
    %c0_22 = arith.constant 0 : index
    %24 = vector.load %arg9[%c0_21, %c0_22] : memref<1x128xf32, #tpu.memory_space<vmem>>, vector<1x128xf32>
    %25 = vector.broadcast %24 : vector<1x128xf32> to vector<16x128xf32>
    %26 = arith.addf %23, %25 : vector<16x128xf32>
    %c0_23 = arith.constant 0 : index
    %c0_24 = arith.constant 0 : index
    %27 = vector.load %arg10[%c0_23, %c0_24] : memref<16x128xf32, #tpu.memory_space<vmem>>, vector<16x128xf32>
    tpu.vector_store %arg10[%c0_23, %c0_24], %26 {strides = array<i32>} : memref<16x128xf32, #tpu.memory_space<vmem>>, vector<16x128xf32>,
    return
  }
  func.func @transform_0(%arg0: i32) -> (i32, i32) {
    %c0_i32 = arith.constant 0 : i32
    %c0_i32_0 = arith.constant 0 : i32
    return %arg0, %c0_i32 : i32, i32
  }
  func.func @transform_1(%arg0: i32) -> (i32, i32) {
    %c0_i32 = arith.constant 0 : i32
    %c0_i32_0 = arith.constant 0 : i32
    %c0_i32_1 = arith.constant 0 : i32
    return %c0_i32, %c0_i32_0 : i32, i32
  }
  func.func @transform_2(%arg0: i32) -> (i32, i32) {
    %c0_i32 = arith.constant 0 : i32
    %c0_i32_0 = arith.constant 0 : i32
    %c0_i32_1 = arith.constant 0 : i32
    return %c0_i32, %c0_i32_0 : i32, i32
  }
  func.func @transform_3(%arg0: i32) -> (i32, i32) {
    %c0_i32 = arith.constant 0 : i32
    %c0_i32_0 = arith.constant 0 : i32
    %c0_i32_1 = arith.constant 0 : i32
    return %c0_i32, %c0_i32_0 : i32, i32
  }
  func.func @transform_4(%arg0: i32) -> (i32, i32) {
    %c0_i32 = arith.constant 0 : i32
    %c0_i32_0 = arith.constant 0 : i32
    %c0_i32_1 = arith.constant 0 : i32
    return %c0_i32, %c0_i32_0 : i32, i32
  }
  func.func @transform_5(%arg0: i32) -> (i32, i32) {
    %c0_i32 = arith.constant 0 : i32
    %c0_i32_0 = arith.constant 0 : i32
    %c0_i32_1 = arith.constant 0 : i32
    return %c0_i32, %c0_i32_0 : i32, i32
  }
  func.func @transform_6(%arg0: i32) -> (i32, i32) {
    %c0_i32 = arith.constant 0 : i32
    %c0_i32_0 = arith.constant 0 : i32
    %c0_i32_1 = arith.constant 0 : i32
    return %c0_i32, %c0_i32_0 : i32, i32
  }
  func.func @transform_7(%arg0: i32) -> (i32, i32) {
    %c0_i32 = arith.constant 0 : i32
    %c0_i32_0 = arith.constant 0 : i32
    %c0_i32_1 = arith.constant 0 : i32
    return %c0_i32, %c0_i32_0 : i32, i32
  }
  func.func @transform_8(%arg0: i32) -> (i32, i32) {
    %c0_i32 = arith.constant 0 : i32
    %c0_i32_0 = arith.constant 0 : i32
    %c0_i32_1 = arith.constant 0 : i32
    return %c0_i32, %c0_i32_0 : i32, i32
  }
  func.func @transform_9(%arg0: i32) -> (i32, i32) {
    %c0_i32 = arith.constant 0 : i32
    %c0_i32_0 = arith.constant 0 : i32
    return %arg0, %c0_i32 : i32, i32
  }
}

</mosaic_0001>

<llo_original>
// kernel: qnetwork_forward.1
$region0: #{qnetwork_forward.1}
  #allocation0 [shape = 'u32[]', space=smem, size = 0x4, offset = 0x4, fixed_abs, tag = 'smem constant byte address 0x4 - core index']
  #allocation1 [shape = 'u32[144,128]{1,0:T(1,128)}', space=vmem, size = 0x12000, scoped, tag = 'internal scratch']
  %s0 = inlined_call_operand.vmem [shape: f32[16,128], index: 0, kind: input, shape index: {}]
  %s1 = inlined_call_operand.vmem [shape: f32[128,128], index: 1, kind: input, shape index: {}]
  %s2 = inlined_call_operand.vmem [shape: f32[1,128], index: 2, kind: input, shape index: {}]
  %s3 = inlined_call_operand.vmem [shape: f32[128,256], index: 3, kind: input, shape index: {}]
  %s4 = inlined_call_operand.vmem [shape: f32[1,256], index: 4, kind: input, shape index: {}]
  %s5 = inlined_call_operand.vmem [shape: f32[256,128], index: 5, kind: input, shape index: {}]
  %s6 = inlined_call_operand.vmem [shape: f32[1,128], index: 6, kind: input, shape index: {}]
  %s7 = inlined_call_operand.vmem [shape: f32[128,128], index: 7, kind: input, shape index: {}]
  %s8 = inlined_call_operand.vmem [shape: f32[1,128], index: 8, kind: input, shape index: {}]
  %s9 = inlined_call_operand.vmem [shape: f32[16,128], index: 9, kind: output, shape index: {}]
  %s10 = sld [smem:[#allocation0]]
  $region46: #{qnetwork_forward.1} parent=0
    _
  %s12 = ssub.s32 1, %s10
  %s13 = scalar_select 0, %s12, %s10
  // Predicated region
  $region2: #{qnetwork_forward.1} parent=0 // pred_check
    _
  $region3: #{qnetwork_forward.1} parent=0 // pred_check_branch
    %15 = sbr.rel (0) target = $region5
  $region4: #{qnetwork_forward.1} parent=0 // pred_region
    _
  $region5: #{qnetwork_forward.1} parent=0 // pred_fallthru
    _
  // Predicated region
  $region6: #{qnetwork_forward.1} parent=0 // pred_check
    _
  $region7: #{qnetwork_forward.1} parent=0 // pred_check_branch
    %17 = sbr.rel (0) target = $region9
  $region8: #{qnetwork_forward.1} parent=0 // pred_region
    _
  $region9: #{qnetwork_forward.1} parent=0 // pred_fallthru
    _
  // Predicated region
  $region10: #{qnetwork_forward.1} parent=0 // pred_check
    _
  $region11: #{qnetwork_forward.1} parent=0 // pred_check_branch
    %19 = sbr.rel (0) target = $region13
  $region12: #{qnetwork_forward.1} parent=0 // pred_region
    _
  $region13: #{qnetwork_forward.1} parent=0 // pred_fallthru
    _
  // Predicated region
  $region14: #{qnetwork_forward.1} parent=0 // pred_check
    _
  $region15: #{qnetwork_forward.1} parent=0 // pred_check_branch
    %21 = sbr.rel (0) target = $region17
  $region16: #{qnetwork_forward.1} parent=0 // pred_region
    _
  $region17: #{qnetwork_forward.1} parent=0 // pred_fallthru
    _
  // Predicated region
  $region18: #{qnetwork_forward.1} parent=0 // pred_check
    _
  $region19: #{qnetwork_forward.1} parent=0 // pred_check_branch
    %23 = sbr.rel (0) target = $region21
  $region20: #{qnetwork_forward.1} parent=0 // pred_region
    _
  $region21: #{qnetwork_forward.1} parent=0 // pred_fallthru
    _
  // Predicated region
  $region22: #{qnetwork_forward.1} parent=0 // pred_check
    _
  $region23: #{qnetwork_forward.1} parent=0 // pred_check_branch
    %25 = sbr.rel (0) target = $region25
  $region24: #{qnetwork_forward.1} parent=0 // pred_region
    _
  $region25: #{qnetwork_forward.1} parent=0 // pred_fallthru
    _
  // Predicated region
  $region26: #{qnetwork_forward.1} parent=0 // pred_check
    _
  $region27: #{qnetwork_forward.1} parent=0 // pred_check_branch
    %27 = sbr.rel (0) target = $region29
  $region28: #{qnetwork_forward.1} parent=0 // pred_region
    _
  $region29: #{qnetwork_forward.1} parent=0 // pred_fallthru
    _
  // Predicated region
  $region30: #{qnetwork_forward.1} parent=0 // pred_check
    _
  $region31: #{qnetwork_forward.1} parent=0 // pred_check_branch
    %29 = sbr.rel (0) target = $region33
  $region32: #{qnetwork_forward.1} parent=0 // pred_region
    _
  $region33: #{qnetwork_forward.1} parent=0 // pred_fallthru
    _
  // Predicated region
  $region34: #{qnetwork_forward.1} parent=0 // pred_check
    _
  $region35: #{qnetwork_forward.1} parent=0 // pred_check_branch
    %31 = sbr.rel (0) target = $region37
  $region36: #{qnetwork_forward.1} parent=0 // pred_region
    _
  $region37: #{qnetwork_forward.1} parent=0 // pred_fallthru
    _
  %v32 = vld [vmem:[%s0] sm:$0xff]
  %v33 = vld [vmem:[%s0 + $0x8] sm:$0xff]
  %v34 = vld [vmem:[%s1] sm:$0xff]
  %v35 = vld [vmem:[%s1 + $0x8] sm:$0xff]
  %v36 = vld [vmem:[%s1 + $0x10] sm:$0xff]
  %v37 = vld [vmem:[%s1 + $0x18] sm:$0xff]
  %v38 = vld [vmem:[%s1 + $0x20] sm:$0xff]
  %v39 = vld [vmem:[%s1 + $0x28] sm:$0xff]
  %v40 = vld [vmem:[%s1 + $0x30] sm:$0xff]
  %v41 = vld [vmem:[%s1 + $0x38] sm:$0xff]
  %v42 = vld [vmem:[%s1 + $0x40] sm:$0xff]
  %v43 = vld [vmem:[%s1 + $0x48] sm:$0xff]
  %v44 = vld [vmem:[%s1 + $0x50] sm:$0xff]
  %v45 = vld [vmem:[%s1 + $0x58] sm:$0xff]
  %v46 = vld [vmem:[%s1 + $0x60] sm:$0xff]
  %v47 = vld [vmem:[%s1 + $0x68] sm:$0xff]
  %v48 = vld [vmem:[%s1 + $0x70] sm:$0xff]
  %v49 = vld [vmem:[%s1 + $0x78] sm:$0xff]
  %v50 = vld [vmem:[%s2] sm:$0x1]
  %v52 = vlaneseq
  %v53 = vshrl.u32 %v52, 7
  %v54 = vsub.s32 0, %v53
  %v55 = vrot.slane %v50, %v54
  %57 = vmatprep.subr.mxu0 0.0
  %58 = vmatpush1.msra.mxu0 %v49
  %59 = vmatprep.subr.mxu0 0.0
  %60 = vmatpush1.msra.mxu0 %v48
  %61 = vmatprep.subr.mxu0 0.0
  %62 = vmatpush1.msra.mxu0 %v47
  %63 = vmatprep.subr.mxu0 0.0
  %64 = vmatpush1.msra.mxu0 %v46
  %65 = vmatprep.subr.mxu0 0.0
  %66 = vmatpush1.msra.mxu0 %v45
  %67 = vmatprep.subr.mxu0 0.0
  %68 = vmatpush1.msra.mxu0 %v44
  %69 = vmatprep.subr.mxu0 0.0
  %70 = vmatpush1.msra.mxu0 %v43
  %71 = vmatprep.subr.mxu0 0.0
  %72 = vmatpush1.msra.mxu0 %v42
  %73 = vmatprep.subr.mxu0 0.0
  %74 = vmatpush1.msra.mxu0 %v41
  %75 = vmatprep.subr.mxu0 0.0
  %76 = vmatpush1.msra.mxu0 %v40
  %77 = vmatprep.subr.mxu0 0.0
  %78 = vmatpush1.msra.mxu0 %v39
  %79 = vmatprep.subr.mxu0 0.0
  %80 = vmatpush1.msra.mxu0 %v38
  %81 = vmatprep.subr.mxu0 0.0
  %82 = vmatpush1.msra.mxu0 %v37
  %83 = vmatprep.subr.mxu0 0.0
  %84 = vmatpush1.msra.mxu0 %v36
  %85 = vmatprep.subr.mxu0 0.0
  %86 = vmatpush1.msra.mxu0 %v35
  %87 = vmatprep.subr.mxu0 0.0
  %88 = vmatpush1.msra.mxu0 %v34
  %89 = vmatprep.subr.mxu0 0.0
  %90 = vmatpush2.msra.mxu0 0.0
  %91 = vmatprep.subr.mxu0 0.0
  %92 = vmatpush2.msra.mxu0 0.0
  %93 = vmatprep.subr.mxu0 0.0
  %94 = vmatpush2.msra.mxu0 0.0
  %95 = vmatprep.subr.mxu0 0.0
  %96 = vmatpush2.msra.mxu0 0.0
  %97 = vmatprep.subr.mxu0 0.0
  %98 = vmatpush2.msra.mxu0 0.0
  %99 = vmatprep.subr.mxu0 0.0
  %100 = vmatpush2.msra.mxu0 0.0
  %101 = vmatprep.subr.mxu0 0.0
  %102 = vmatpush2.msra.mxu0 0.0
  %103 = vmatprep.subr.mxu0 0.0
  %104 = vmatpush2.msra.mxu0 0.0
  %105 = vmatprep.subr.mxu0 0.0
  %106 = vmatpush2.msra.mxu0 0.0
  %107 = vmatprep.subr.mxu0 0.0
  %108 = vmatpush2.msra.mxu0 0.0
  %109 = vmatprep.subr.mxu0 0.0
  %110 = vmatpush2.msra.mxu0 0.0
  %111 = vmatprep.subr.mxu0 0.0
  %112 = vmatpush2.msra.mxu0 0.0
  %113 = vmatprep.subr.mxu0 0.0
  %114 = vmatpush2.msra.mxu0 0.0
  %115 = vmatprep.subr.mxu0 0.0
  %116 = vmatpush2.msra.mxu0 0.0
  %117 = vmatprep.subr.mxu0 0.0
  %118 = vmatpush2.msra.mxu0 0.0
  %119 = vmatprep.subr.mxu0 0.0
  %120 = vmatpush2.msra.mxu0 0.0
  %121 = vmatprep.mubr.f32.mxu0 0.0
  %122 = vmatmul.mubr.f32.gmra.mxu0 %v32
  %v123 = vpop.f32.mrf.mxu0
  %v124 = vadd.f32 %v55, %v123
  %v125 = vpop.f32.mrf.mxu0
  %126 = vmatprep.mubr.f32.mxu0 0.0
  %127 = vmatmul.mubr.f32.gmra.mxu0 %v33
  %v128 = vpop.f32.mrf.mxu0
  %v129 = vadd.f32 %v55, %v128
  %v130 = vpop.f32.mrf.mxu0
  %131 = vdwg.mxu0
  %v132 = vmax.f32 %v124, 0.0
  %v133 = vmax.f32 %v129, 0.0
  %v134 = vld [vmem:[%s3] sm:$0xff]
  %v135 = vld [vmem:[%s3 + $0x8] sm:$0xff]
  %v136 = vld [vmem:[%s3 + $0x10] sm:$0xff]
  %v137 = vld [vmem:[%s3 + $0x18] sm:$0xff]
  %v138 = vld [vmem:[%s3 + $0x20] sm:$0xff]
  %v139 = vld [vmem:[%s3 + $0x28] sm:$0xff]
  %v140 = vld [vmem:[%s3 + $0x30] sm:$0xff]
  %v141 = vld [vmem:[%s3 + $0x38] sm:$0xff]
  %v142 = vld [vmem:[%s3 + $0x40] sm:$0xff]
  %v143 = vld [vmem:[%s3 + $0x48] sm:$0xff]
  %v144 = vld [vmem:[%s3 + $0x50] sm:$0xff]
  %v145 = vld [vmem:[%s3 + $0x58] sm:$0xff]
  %v146 = vld [vmem:[%s3 + $0x60] sm:$0xff]
  %v147 = vld [vmem:[%s3 + $0x68] sm:$0xff]
  %v148 = vld [vmem:[%s3 + $0x70] sm:$0xff]
  %v149 = vld [vmem:[%s3 + $0x78] sm:$0xff]
  %v150 = vld [vmem:[%s3 + $0x80] sm:$0xff]
  %v151 = vld [vmem:[%s3 + $0x88] sm:$0xff]
  %v152 = vld [vmem:[%s3 + $0x90] sm:$0xff]
  %v153 = vld [vmem:[%s3 + $0x98] sm:$0xff]
  %v154 = vld [vmem:[%s3 + $0xa0] sm:$0xff]
  %v155 = vld [vmem:[%s3 + $0xa8] sm:$0xff]
  %v156 = vld [vmem:[%s3 + $0xb0] sm:$0xff]
  %v157 = vld [vmem:[%s3 + $0xb8] sm:$0xff]
  %v158 = vld [vmem:[%s3 + $0xc0] sm:$0xff]
  %v159 = vld [vmem:[%s3 + $0xc8] sm:$0xff]
  %v160 = vld [vmem:[%s3 + $0xd0] sm:$0xff]
  %v161 = vld [vmem:[%s3 + $0xd8] sm:$0xff]
  %v162 = vld [vmem:[%s3 + $0xe0] sm:$0xff]
  %v163 = vld [vmem:[%s3 + $0xe8] sm:$0xff]
  %v164 = vld [vmem:[%s3 + $0xf0] sm:$0xff]
  %v165 = vld [vmem:[%s3 + $0xf8] sm:$0xff]
  %v166 = vld [vmem:[%s4] sm:$0x3]
  %v168 = vlaneseq
  %v169 = vshrl.u32 %v168, 7
  %v170 = vsub.s32 0, %v169
  %v171 = vrot.slane %v166, %v170
  %v172 = vlaneseq
  %v173 = vshrl.u32 %v172, 7
  %v174 = vsub.s32 1, %v173
  %v175 = vrot.slane %v166, %v174
  %178 = vmatprep.subr.mxu0 %v165
  %179 = vmatpush1.msra.mxu0 %v164
  %180 = vmatprep.subr.mxu0 %v163
  %181 = vmatpush1.msra.mxu0 %v162
  %182 = vmatprep.subr.mxu0 %v161
  %183 = vmatpush1.msra.mxu0 %v160
  %184 = vmatprep.subr.mxu0 %v159
  %185 = vmatpush1.msra.mxu0 %v158
  %186 = vmatprep.subr.mxu0 %v157
  %187 = vmatpush1.msra.mxu0 %v156
  %188 = vmatprep.subr.mxu0 %v155
  %189 = vmatpush1.msra.mxu0 %v154
  %190 = vmatprep.subr.mxu0 %v153
  %191 = vmatpush1.msra.mxu0 %v152
  %192 = vmatprep.subr.mxu0 %v151
  %193 = vmatpush1.msra.mxu0 %v150
  %194 = vmatprep.subr.mxu0 %v149
  %195 = vmatpush1.msra.mxu0 %v148
  %196 = vmatprep.subr.mxu0 %v147
  %197 = vmatpush1.msra.mxu0 %v146
  %198 = vmatprep.subr.mxu0 %v145
  %199 = vmatpush1.msra.mxu0 %v144
  %200 = vmatprep.subr.mxu0 %v143
  %201 = vmatpush1.msra.mxu0 %v142
  %202 = vmatprep.subr.mxu0 %v141
  %203 = vmatpush1.msra.mxu0 %v140
  %204 = vmatprep.subr.mxu0 %v139
  %205 = vmatpush1.msra.mxu0 %v138
  %206 = vmatprep.subr.mxu0 %v137
  %207 = vmatpush1.msra.mxu0 %v136
  %208 = vmatprep.subr.mxu0 %v135
  %209 = vmatpush1.msra.mxu0 %v134
  %210 = vmatprep.subr.mxu0 0.0
  %211 = vmatpush2.msra.mxu0 0.0
  %212 = vmatprep.subr.mxu0 0.0
  %213 = vmatpush2.msra.mxu0 0.0
  %214 = vmatprep.subr.mxu0 0.0
  %215 = vmatpush2.msra.mxu0 0.0
  %216 = vmatprep.subr.mxu0 0.0
  %217 = vmatpush2.msra.mxu0 0.0
  %218 = vmatprep.subr.mxu0 0.0
  %219 = vmatpush2.msra.mxu0 0.0
  %220 = vmatprep.subr.mxu0 0.0
  %221 = vmatpush2.msra.mxu0 0.0
  %222 = vmatprep.subr.mxu0 0.0
  %223 = vmatpush2.msra.mxu0 0.0
  %224 = vmatprep.subr.mxu0 0.0
  %225 = vmatpush2.msra.mxu0 0.0
  %226 = vmatprep.subr.mxu0 0.0
  %227 = vmatpush2.msra.mxu0 0.0
  %228 = vmatprep.subr.mxu0 0.0
  %229 = vmatpush2.msra.mxu0 0.0
  %230 = vmatprep.subr.mxu0 0.0
  %231 = vmatpush2.msra.mxu0 0.0
  %232 = vmatprep.subr.mxu0 0.0
  %233 = vmatpush2.msra.mxu0 0.0
  %234 = vmatprep.subr.mxu0 0.0
  %235 = vmatpush2.msra.mxu0 0.0
  %236 = vmatprep.subr.mxu0 0.0
  %237 = vmatpush2.msra.mxu0 0.0
  %238 = vmatprep.subr.mxu0 0.0
  %239 = vmatpush2.msra.mxu0 0.0
  %240 = vmatprep.subr.mxu0 0.0
  %241 = vmatpush2.msra.mxu0 0.0
  %242 = vmatprep.mubr.f32.mxu0 0.0
  %243 = vmatmul.mubr.f32.gmra.mxu0 %v132
  %v244 = vpop.f32.mrf.mxu0
  %v245 = vadd.f32 %v171, %v244
  %v246 = vpop.f32.mrf.mxu0
  %v247 = vadd.f32 %v175, %v246
  %248 = vmatprep.mubr.f32.mxu0 0.0
  %249 = vmatmul.mubr.f32.gmra.mxu0 %v133
  %v250 = vpop.f32.mrf.mxu0
  %v251 = vadd.f32 %v171, %v250
  %v252 = vpop.f32.mrf.mxu0
  %v253 = vadd.f32 %v175, %v252
  %254 = vdwg.mxu0
  %v255 = vmax.f32 %v245, 0.0
  %v256 = vmax.f32 %v247, 0.0
  %v257 = vmax.f32 %v251, 0.0
  %v258 = vmax.f32 %v253, 0.0
  %v259 = vld [vmem:[%s5] sm:$0xff]
  %v260 = vld [vmem:[%s5 + $0x8] sm:$0xff]
  %v261 = vld [vmem:[%s5 + $0x10] sm:$0xff]
  %v262 = vld [vmem:[%s5 + $0x18] sm:$0xff]
  %v263 = vld [vmem:[%s5 + $0x20] sm:$0xff]
  %v264 = vld [vmem:[%s5 + $0x28] sm:$0xff]
  %v265 = vld [vmem:[%s5 + $0x30] sm:$0xff]
  %v266 = vld [vmem:[%s5 + $0x38] sm:$0xff]
  %v267 = vld [vmem:[%s5 + $0x40] sm:$0xff]
  %v268 = vld [vmem:[%s5 + $0x48] sm:$0xff]
  %v269 = vld [vmem:[%s5 + $0x50] sm:$0xff]
  %v270 = vld [vmem:[%s5 + $0x58] sm:$0xff]
  %v271 = vld [vmem:[%s5 + $0x60] sm:$0xff]
  %v272 = vld [vmem:[%s5 + $0x68] sm:$0xff]
  %v273 = vld [vmem:[%s5 + $0x70] sm:$0xff]
  %v274 = vld [vmem:[%s5 + $0x78] sm:$0xff]
  %v275 = vld [vmem:[%s5 + $0x80] sm:$0xff]
  %v276 = vld [vmem:[%s5 + $0x88] sm:$0xff]
  %v277 = vld [vmem:[%s5 + $0x90] sm:$0xff]
  %v278 = vld [vmem:[%s5 + $0x98] sm:$0xff]
  %v279 = vld [vmem:[%s5 + $0xa0] sm:$0xff]
  %v280 = vld [vmem:[%s5 + $0xa8] sm:$0xff]
  %v281 = vld [vmem:[%s5 + $0xb0] sm:$0xff]
  %v282 = vld [vmem:[%s5 + $0xb8] sm:$0xff]
  %v283 = vld [vmem:[%s5 + $0xc0] sm:$0xff]
  %v284 = vld [vmem:[%s5 + $0xc8] sm:$0xff]
  %v285 = vld [vmem:[%s5 + $0xd0] sm:$0xff]
  %v286 = vld [vmem:[%s5 + $0xd8] sm:$0xff]
  %v287 = vld [vmem:[%s5 + $0xe0] sm:$0xff]
  %v288 = vld [vmem:[%s5 + $0xe8] sm:$0xff]
  %v289 = vld [vmem:[%s5 + $0xf0] sm:$0xff]
  %v290 = vld [vmem:[%s5 + $0xf8] sm:$0xff]
  %v291 = vld [vmem:[%s6] sm:$0x1]
  %v293 = vlaneseq
  %v294 = vshrl.u32 %v293, 7
  %v295 = vsub.s32 0, %v294
  %v296 = vrot.slane %v291, %v295
  %298 = vmatprep.subr.mxu0 0.0
  %299 = vmatpush1.msra.mxu0 %v274
  %300 = vmatprep.subr.mxu0 0.0
  %301 = vmatpush1.msra.mxu0 %v273
  %302 = vmatprep.subr.mxu0 0.0
  %303 = vmatpush1.msra.mxu0 %v272
  %304 = vmatprep.subr.mxu0 0.0
  %305 = vmatpush1.msra.mxu0 %v271
  %306 = vmatprep.subr.mxu0 0.0
  %307 = vmatpush1.msra.mxu0 %v270
  %308 = vmatprep.subr.mxu0 0.0
  %309 = vmatpush1.msra.mxu0 %v269
  %310 = vmatprep.subr.mxu0 0.0
  %311 = vmatpush1.msra.mxu0 %v268
  %312 = vmatprep.subr.mxu0 0.0
  %313 = vmatpush1.msra.mxu0 %v267
  %314 = vmatprep.subr.mxu0 0.0
  %315 = vmatpush1.msra.mxu0 %v266
  %316 = vmatprep.subr.mxu0 0.0
  %317 = vmatpush1.msra.mxu0 %v265
  %318 = vmatprep.subr.mxu0 0.0
  %319 = vmatpush1.msra.mxu0 %v264
  %320 = vmatprep.subr.mxu0 0.0
  %321 = vmatpush1.msra.mxu0 %v263
  %322 = vmatprep.subr.mxu0 0.0
  %323 = vmatpush1.msra.mxu0 %v262
  %324 = vmatprep.subr.mxu0 0.0
  %325 = vmatpush1.msra.mxu0 %v261
  %326 = vmatprep.subr.mxu0 0.0
  %327 = vmatpush1.msra.mxu0 %v260
  %328 = vmatprep.subr.mxu0 0.0
  %329 = vmatpush1.msra.mxu0 %v259
  %330 = vmatprep.subr.mxu0 0.0
  %331 = vmatpush2.msra.mxu0 %v290
  %332 = vmatprep.subr.mxu0 0.0
  %333 = vmatpush2.msra.mxu0 %v289
  %334 = vmatprep.subr.mxu0 0.0
  %335 = vmatpush2.msra.mxu0 %v288
  %336 = vmatprep.subr.mxu0 0.0
  %337 = vmatpush2.msra.mxu0 %v287
  %338 = vmatprep.subr.mxu0 0.0
  %339 = vmatpush2.msra.mxu0 %v286
  %340 = vmatprep.subr.mxu0 0.0
  %341 = vmatpush2.msra.mxu0 %v285
  %342 = vmatprep.subr.mxu0 0.0
  %343 = vmatpush2.msra.mxu0 %v284
  %344 = vmatprep.subr.mxu0 0.0
  %345 = vmatpush2.msra.mxu0 %v283
  %346 = vmatprep.subr.mxu0 0.0
  %347 = vmatpush2.msra.mxu0 %v282
  %348 = vmatprep.subr.mxu0 0.0
  %349 = vmatpush2.msra.mxu0 %v281
  %350 = vmatprep.subr.mxu0 0.0
  %351 = vmatpush2.msra.mxu0 %v280
  %352 = vmatprep.subr.mxu0 0.0
  %353 = vmatpush2.msra.mxu0 %v279
  %354 = vmatprep.subr.mxu0 0.0
  %355 = vmatpush2.msra.mxu0 %v278
  %356 = vmatprep.subr.mxu0 0.0
  %357 = vmatpush2.msra.mxu0 %v277
  %358 = vmatprep.subr.mxu0 0.0
  %359 = vmatpush2.msra.mxu0 %v276
  %360 = vmatprep.subr.mxu0 0.0
  %361 = vmatpush2.msra.mxu0 %v275
  %362 = vmatprep.mubr.f32.mxu0 %v256
  %363 = vmatmul.mubr.f32.gmra.mxu0 %v255
  %v364 = vpop.f32.mrf.mxu0
  %v365 = vadd.f32 %v296, %v364
  %v366 = vpop.f32.mrf.mxu0
  %367 = vmatprep.mubr.f32.mxu0 %v258
  %368 = vmatmul.mubr.f32.gmra.mxu0 %v257
  %v369 = vpop.f32.mrf.mxu0
  %v370 = vadd.f32 %v296, %v369
  %v371 = vpop.f32.mrf.mxu0
  %372 = vdwg.mxu0
  %v373 = vmax.f32 %v365, 0.0
  %v374 = vmax.f32 %v370, 0.0
  %v375 = vld [vmem:[%s7] sm:$0xff]
  %v376 = vld [vmem:[%s7 + $0x8] sm:$0xff]
  %v377 = vld [vmem:[%s7 + $0x10] sm:$0xff]
  %v378 = vld [vmem:[%s7 + $0x18] sm:$0xff]
  %v379 = vld [vmem:[%s7 + $0x20] sm:$0xff]
  %v380 = vld [vmem:[%s7 + $0x28] sm:$0xff]
  %v381 = vld [vmem:[%s7 + $0x30] sm:$0xff]
  %v382 = vld [vmem:[%s7 + $0x38] sm:$0xff]
  %v383 = vld [vmem:[%s7 + $0x40] sm:$0xff]
  %v384 = vld [vmem:[%s7 + $0x48] sm:$0xff]
  %v385 = vld [vmem:[%s7 + $0x50] sm:$0xff]
  %v386 = vld [vmem:[%s7 + $0x58] sm:$0xff]
  %v387 = vld [vmem:[%s7 + $0x60] sm:$0xff]
  %v388 = vld [vmem:[%s7 + $0x68] sm:$0xff]
  %v389 = vld [vmem:[%s7 + $0x70] sm:$0xff]
  %v390 = vld [vmem:[%s7 + $0x78] sm:$0xff]
  %v391 = vld [vmem:[%s8] sm:$0x1]
  %v393 = vlaneseq
  %v394 = vshrl.u32 %v393, 7
  %v395 = vsub.s32 0, %v394
  %v396 = vrot.slane %v391, %v395
  %398 = vmatprep.subr.mxu0 0.0
  %399 = vmatpush1.msra.mxu0 %v390
  %400 = vmatprep.subr.mxu0 0.0
  %401 = vmatpush1.msra.mxu0 %v389
  %402 = vmatprep.subr.mxu0 0.0
  %403 = vmatpush1.msra.mxu0 %v388
  %404 = vmatprep.subr.mxu0 0.0
  %405 = vmatpush1.msra.mxu0 %v387
  %406 = vmatprep.subr.mxu0 0.0
  %407 = vmatpush1.msra.mxu0 %v386
  %408 = vmatprep.subr.mxu0 0.0
  %409 = vmatpush1.msra.mxu0 %v385
  %410 = vmatprep.subr.mxu0 0.0
  %411 = vmatpush1.msra.mxu0 %v384
  %412 = vmatprep.subr.mxu0 0.0
  %413 = vmatpush1.msra.mxu0 %v383
  %414 = vmatprep.subr.mxu0 0.0
  %415 = vmatpush1.msra.mxu0 %v382
  %416 = vmatprep.subr.mxu0 0.0
  %417 = vmatpush1.msra.mxu0 %v381
  %418 = vmatprep.subr.mxu0 0.0
  %419 = vmatpush1.msra.mxu0 %v380
  %420 = vmatprep.subr.mxu0 0.0
  %421 = vmatpush1.msra.mxu0 %v379
  %422 = vmatprep.subr.mxu0 0.0
  %423 = vmatpush1.msra.mxu0 %v378
  %424 = vmatprep.subr.mxu0 0.0
  %425 = vmatpush1.msra.mxu0 %v377
  %426 = vmatprep.subr.mxu0 0.0
  %427 = vmatpush1.msra.mxu0 %v376
  %428 = vmatprep.subr.mxu0 0.0
  %429 = vmatpush1.msra.mxu0 %v375
  %430 = vmatprep.subr.mxu0 0.0
  %431 = vmatpush2.msra.mxu0 0.0
  %432 = vmatprep.subr.mxu0 0.0
  %433 = vmatpush2.msra.mxu0 0.0
  %434 = vmatprep.subr.mxu0 0.0
  %435 = vmatpush2.msra.mxu0 0.0
  %436 = vmatprep.subr.mxu0 0.0
  %437 = vmatpush2.msra.mxu0 0.0
  %438 = vmatprep.subr.mxu0 0.0
  %439 = vmatpush2.msra.mxu0 0.0
  %440 = vmatprep.subr.mxu0 0.0
  %441 = vmatpush2.msra.mxu0 0.0
  %442 = vmatprep.subr.mxu0 0.0
  %443 = vmatpush2.msra.mxu0 0.0
  %444 = vmatprep.subr.mxu0 0.0
  %445 = vmatpush2.msra.mxu0 0.0
  %446 = vmatprep.subr.mxu0 0.0
  %447 = vmatpush2.msra.mxu0 0.0
  %448 = vmatprep.subr.mxu0 0.0
  %449 = vmatpush2.msra.mxu0 0.0
  %450 = vmatprep.subr.mxu0 0.0
  %451 = vmatpush2.msra.mxu0 0.0
  %452 = vmatprep.subr.mxu0 0.0
  %453 = vmatpush2.msra.mxu0 0.0
  %454 = vmatprep.subr.mxu0 0.0
  %455 = vmatpush2.msra.mxu0 0.0
  %456 = vmatprep.subr.mxu0 0.0
  %457 = vmatpush2.msra.mxu0 0.0
  %458 = vmatprep.subr.mxu0 0.0
  %459 = vmatpush2.msra.mxu0 0.0
  %460 = vmatprep.subr.mxu0 0.0
  %461 = vmatpush2.msra.mxu0 0.0
  %462 = vmatprep.mubr.f32.mxu0 0.0
  %463 = vmatmul.mubr.f32.gmra.mxu0 %v373
  %v464 = vpop.f32.mrf.mxu0
  %v465 = vadd.f32 %v396, %v464
  %v466 = vpop.f32.mrf.mxu0
  %467 = vmatprep.mubr.f32.mxu0 0.0
  %468 = vmatmul.mubr.f32.gmra.mxu0 %v374
  %v469 = vpop.f32.mrf.mxu0
  %v470 = vadd.f32 %v396, %v469
  %v471 = vpop.f32.mrf.mxu0
  %472 = vdwg.mxu0
  %473 = vst [vmem:[%s9] sm:$0xff] %v465
  %474 = vst [vmem:[%s9 + $0x8] sm:$0xff] %v470
  // Predicated region
  $region38: #{qnetwork_forward.1} parent=0 // pred_check
    _
  $region39: #{qnetwork_forward.1} parent=0 // pred_check_branch
    %476 = sbr.rel (0) target = $region41
  $region40: #{qnetwork_forward.1} parent=0 // pred_region
    _
  $region41: #{qnetwork_forward.1} parent=0 // pred_fallthru
    _
  // Predicated region
  $region42: #{qnetwork_forward.1} parent=0 // pred_check
    _
  $region43: #{qnetwork_forward.1} parent=0 // pred_check_branch
    %478 = sbr.rel (0) target = $region45
  $region44: #{qnetwork_forward.1} parent=0 // pred_region
    _
  $region45: #{qnetwork_forward.1} parent=0 // pred_fallthru
    _

</llo_original>
